<compile_context>
chip_gen: v7x
topology: tpu7x:2x2x1
jax: 0.10.0
libtpu: 0.0.40
codegen_flags: <defaults>
</compile_context>

<pallas_src>
import jax
import jax.numpy as jnp
from jax.experimental import pallas as pl
from jax.experimental.pallas import tpu as pltpu

LANES = 128
MAX_TILE_ROWS = 1024      # (1024,128) f32 block = 512 KiB; 2 inputs x 2 buffers = 2 MiB VMEM
NUM_CORE_SPLITS = 2       # leading "parallel" axis for v7x megacore


def _make_dice_kernel(tile_rows, rows, blocks_per_split, need_mask):
    def kernel(x_ref, t_ref, o_ref):
        c = pl.program_id(0)   # core-split index ("parallel")
        i = pl.program_id(1)   # block index within split ("arbitrary" reduction axis)

        @pl.when(i == 0)
        def _():
            o_ref[...] = jnp.zeros_like(o_ref)

        x = x_ref[...].astype(jnp.float32)
        t = t_ref[...].astype(jnp.float32)
        s = jax.nn.sigmoid(x)

        if need_mask:
            # Un-clamped global block id; rows past `rows` (edge padding or the
            # clamped duplicate block) are zeroed.
            blk = c * blocks_per_split + i
            row0 = blk * tile_rows
            row_ids = jax.lax.broadcasted_iota(jnp.int32, (tile_rows, LANES), 0)
            valid = (row0 + row_ids) < rows
            s = jnp.where(valid, s, 0.0)
            t = jnp.where(valid, t, 0.0)

        def fold(v):  # (tile_rows, 128) -> (8, 128), pure VPU adds across vregs
            return jnp.sum(v.reshape(tile_rows // 8, 8, LANES), axis=0)

        o_ref[0] += fold(s * t)   # intersection partials
        o_ref[1] += fold(s)       # sum(sigmoid(x)) partials
        o_ref[2] += fold(t)       # sum(targets) partials

    return kernel


def dice_loss(inputs, targets, smooth=1.0):
    """Pallas implementation of DiceLoss.forward."""
    x = inputs.reshape(-1)
    t = targets.reshape(-1)
    n = x.shape[0]

    # Rows handed to the kernel: multiple of 8 sublanes; remainder handled as a tail.
    rows = (n // (8 * LANES)) * 8
    bulk = rows * LANES
    tail = n - bulk

    inter = jnp.float32(0.0)
    s_sum = jnp.float32(0.0)
    t_sum = jnp.float32(0.0)

    if rows > 0:
        x2 = x[:bulk].reshape(rows, LANES)
        t2 = t[:bulk].reshape(rows, LANES)

        tile_rows = min(MAX_TILE_ROWS, rows)
        nblk = pl.cdiv(rows, tile_rows)
        num_splits = NUM_CORE_SPLITS if nblk >= NUM_CORE_SPLITS else 1
        bps = pl.cdiv(nblk, num_splits)                     # blocks per split
        need_mask = (num_splits * bps * tile_rows != rows)  # edge / duplicate blocks exist

        def in_map(c, i):
            # Clamp so the DMA never starts past the array; duplicates are zero-masked.
            return (jnp.minimum(c * bps + i, nblk - 1), 0)

        kernel = _make_dice_kernel(tile_rows, rows, bps, need_mask)

        partials = pl.pallas_call(
            kernel,
            out_shape=jax.ShapeDtypeStruct((num_splits * 3, 8, LANES), jnp.float32),
            grid_spec=pltpu.PrefetchScalarGridSpec(
                num_scalar_prefetch=0,
                grid=(num_splits, bps),
                in_specs=[pl.BlockSpec((tile_rows, LANES), in_map),
                          pl.BlockSpec((tile_rows, LANES), in_map)],
                out_specs=pl.BlockSpec((3, 8, LANES), lambda c, i: (c, 0, 0)),
            ),
            compiler_params=pltpu.CompilerParams(
                dimension_semantics=("parallel", "arbitrary"),
            ),
        )(x2, t2)

        partials = partials.reshape(num_splits, 3, 8, LANES)
        inter = inter + jnp.sum(partials[:, 0])
        s_sum = s_sum + jnp.sum(partials[:, 1])
        t_sum = t_sum + jnp.sum(partials[:, 2])

    if tail > 0:
        # <8*128+127 elements: handle with plain JAX instead of padding whole arrays.
        x_t = x[bulk:].astype(jnp.float32)
        t_t = t[bulk:].astype(jnp.float32)
        s_t = jax.nn.sigmoid(x_t)
        inter = inter + jnp.sum(s_t * t_t)
        s_sum = s_sum + jnp.sum(s_t)
        t_sum = t_sum + jnp.sum(t_t)

    smooth = jnp.float32(smooth)
    dice = (2.0 * inter + smooth) / (s_sum + t_sum + smooth)
    return (1.0 - dice).astype(jnp.float32)


def _dice_loss_ref(inputs, targets, smooth=1.0):
    x = jax.nn.sigmoid(inputs.reshape(-1).astype(jnp.float32))
    t = targets.reshape(-1).astype(jnp.float32)
    inter = jnp.sum(x * t)
    dice = (2.0 * inter + smooth) / (jnp.sum(x) + jnp.sum(t) + smooth)
    return 1.0 - dice


if __name__ == "__main__":
    key = jax.random.PRNGKey(0)
    k1, k2, k3, k4 = jax.random.split(key, 4)

    # Typical segmentation shapes: logits + binary targets, NCHW.
    inputs = jax.random.normal(k1, (2, 4, 16, 16), dtype=jnp.float32)
    targets = (jax.random.uniform(k2, (2, 4, 16, 16)) > 0.5).astype(jnp.float32)

    loss = dice_loss(inputs, targets)
    jax.block_until_ready(loss)
    ref = _dice_loss_ref(inputs, targets)
    assert jnp.allclose(loss, ref, rtol=2e-5, atol=2e-6), (loss, ref)

    # Second check: 3072 rows -> 3 blocks on a (2, 2) grid; exercises the 2-way
    # core split, the clamped duplicate block and the in-kernel mask path.
    inputs2 = jax.random.normal(k3, (3, 8, 128, 128), dtype=jnp.float32)
    targets2 = (jax.random.uniform(k4, (3, 8, 128, 128)) > 0.5).astype(jnp.float32)

    loss2 = dice_loss(inputs2, targets2)
    jax.block_until_ready(loss2)
    ref2 = _dice_loss_ref(inputs2, targets2)
    assert jnp.allclose(loss2, ref2, rtol=2e-5, atol=2e-6), (loss2, ref2)

    print("KERNEL_OK")
</pallas_src>

<mosaic_0001>
module attributes {stable_mosaic.version = 11 : i64} {
  func.func @kernel(%arg0: i32, %arg1: i32, %arg2: memref<16x128xf32, #tpu.memory_space<vmem>>, %arg3: memref<16x128xf32, #tpu.memory_space<vmem>>, %arg4: memref<3x8x128xf32, #tpu.memory_space<vmem>>) attributes {dimension_semantics = [#tpu.dimension_semantics<parallel>, #tpu.dimension_semantics<arbitrary>], iteration_bounds = array<i64: 1, 1>, scalar_prefetch = 0 : i64, scratch_operands = 0 : i64, tpu.core_type = #tpu.core_type<tc>, window_params = [{transform_indices = @transform_0, window_bounds = array<i64: 16, 128>}, {transform_indices = @transform_1, window_bounds = array<i64: 16, 128>}, {transform_indices = @transform_2, window_bounds = array<i64: 3, 8, 128>}]} {
    %c0_i32 = arith.constant 0 : i32
    %0 = arith.cmpi eq, %arg1, %c0_i32 : i32
    %1 = arith.extui %0 : i1 to i32
    %c0_i32_0 = arith.constant 0 : i32
    %2 = arith.cmpi ne, %1, %c0_i32_0 : i32
    scf.if %2 {
      %cst_23 = arith.constant 0.000000e+00 : f32
      %35 = vector.broadcast %cst_23 : f32 to vector<3x8x128xf32>
      %c0_24 = arith.constant 0 : index
      %c0_25 = arith.constant 0 : index
      %c0_26 = arith.constant 0 : index
      %36 = vector.load %arg4[%c0_24, %c0_25, %c0_26] : memref<3x8x128xf32, #tpu.memory_space<vmem>>, vector<3x8x128xf32>
      tpu.vector_store %arg4[%c0_24, %c0_25, %c0_26], %35 {strides = array<i32>} : memref<3x8x128xf32, #tpu.memory_space<vmem>>, vector<3x8x128xf32>,
    } else {
    }
    %c0 = arith.constant 0 : index
    %c0_1 = arith.constant 0 : index
    %3 = vector.load %arg2[%c0, %c0_1] : memref<16x128xf32, #tpu.memory_space<vmem>>, vector<16x128xf32>
    %c0_2 = arith.constant 0 : index
    %c0_3 = arith.constant 0 : index
    %4 = vector.load %arg3[%c0_2, %c0_3] : memref<16x128xf32, #tpu.memory_space<vmem>>, vector<16x128xf32>
    %5 = arith.negf %3 : vector<16x128xf32>
    %6 = math.exp %5 : vector<16x128xf32>
    %cst = arith.constant 1.000000e+00 : f32
    %7 = vector.broadcast %cst : f32 to vector<16x128xf32>
    %8 = arith.addf %7, %6 : vector<16x128xf32>
    %9 = arith.divf %7, %8 : vector<16x128xf32>
    %c0_4 = arith.constant 0 : index
    %c0_5 = arith.constant 0 : index
    %c0_6 = arith.constant 0 : index
    %10 = vector.load %arg4[%c0_4, %c0_5, %c0_6] : memref<3x8x128xf32, #tpu.memory_space<vmem>>, vector<1x8x128xf32>
    %11 = vector.shape_cast %10 : vector<1x8x128xf32> to vector<8x128xf32>
    %12 = arith.mulf %9, %4 : vector<16x128xf32>
    %13 = vector.shape_cast %12 : vector<16x128xf32> to vector<2x8x128xf32>
    %cst_7 = arith.constant dense<0.000000e+00> : vector<8x128xf32>
    %14 = vector.multi_reduction <add>, %13, %cst_7 [0] : vector<2x8x128xf32> to vector<8x128xf32>
    %15 = arith.addf %11, %14 : vector<8x128xf32>
    %c0_8 = arith.constant 0 : index
    %c0_9 = arith.constant 0 : index
    %c0_10 = arith.constant 0 : index
    %16 = vector.load %arg4[%c0_8, %c0_9, %c0_10] : memref<3x8x128xf32, #tpu.memory_space<vmem>>, vector<1x8x128xf32>
    %17 = vector.shape_cast %16 : vector<1x8x128xf32> to vector<8x128xf32>
    %18 = vector.shape_cast %15 : vector<8x128xf32> to vector<1x8x128xf32>
    tpu.vector_store %arg4[%c0_8, %c0_9, %c0_10], %18 {strides = array<i32>} : memref<3x8x128xf32, #tpu.memory_space<vmem>>, vector<1x8x128xf32>,
    %c1 = arith.constant 1 : index
    %c0_11 = arith.constant 0 : index
    %c0_12 = arith.constant 0 : index
    %19 = vector.load %arg4[%c1, %c0_11, %c0_12] : memref<3x8x128xf32, #tpu.memory_space<vmem>>, vector<1x8x128xf32>
    %20 = vector.shape_cast %19 : vector<1x8x128xf32> to vector<8x128xf32>
    %21 = vector.shape_cast %9 : vector<16x128xf32> to vector<2x8x128xf32>
    %cst_13 = arith.constant dense<0.000000e+00> : vector<8x128xf32>
    %22 = vector.multi_reduction <add>, %21, %cst_13 [0] : vector<2x8x128xf32> to vector<8x128xf32>
    %23 = arith.addf %20, %22 : vector<8x128xf32>
    %c1_14 = arith.constant 1 : index
    %c0_15 = arith.constant 0 : index
    %c0_16 = arith.constant 0 : index
    %24 = vector.load %arg4[%c1_14, %c0_15, %c0_16] : memref<3x8x128xf32, #tpu.memory_space<vmem>>, vector<1x8x128xf32>
    %25 = vector.shape_cast %24 : vector<1x8x128xf32> to vector<8x128xf32>
    %26 = vector.shape_cast %23 : vector<8x128xf32> to vector<1x8x128xf32>
    tpu.vector_store %arg4[%c1_14, %c0_15, %c0_16], %26 {strides = array<i32>} : memref<3x8x128xf32, #tpu.memory_space<vmem>>, vector<1x8x128xf32>,
    %c2 = arith.constant 2 : index
    %c0_17 = arith.constant 0 : index
    %c0_18 = arith.constant 0 : index
    %27 = vector.load %arg4[%c2, %c0_17, %c0_18] : memref<3x8x128xf32, #tpu.memory_space<vmem>>, vector<1x8x128xf32>
    %28 = vector.shape_cast %27 : vector<1x8x128xf32> to vector<8x128xf32>
    %29 = vector.shape_cast %4 : vector<16x128xf32> to vector<2x8x128xf32>
    %cst_19 = arith.constant dense<0.000000e+00> : vector<8x128xf32>
    %30 = vector.multi_reduction <add>, %29, %cst_19 [0] : vector<2x8x128xf32> to vector<8x128xf32>
    %31 = arith.addf %28, %30 : vector<8x128xf32>
    %c2_20 = arith.constant 2 : index
    %c0_21 = arith.constant 0 : index
    %c0_22 = arith.constant 0 : index
    %32 = vector.load %arg4[%c2_20, %c0_21, %c0_22] : memref<3x8x128xf32, #tpu.memory_space<vmem>>, vector<1x8x128xf32>
    %33 = vector.shape_cast %32 : vector<1x8x128xf32> to vector<8x128xf32>
    %34 = vector.shape_cast %31 : vector<8x128xf32> to vector<1x8x128xf32>
    tpu.vector_store %arg4[%c2_20, %c0_21, %c0_22], %34 {strides = array<i32>} : memref<3x8x128xf32, #tpu.memory_space<vmem>>, vector<1x8x128xf32>,
    return
  }
  func.func @transform_0(%arg0: i32, %arg1: i32) -> (i32, i32) {
    %c1_i32 = arith.constant 1 : i32
    %0 = arith.muli %arg0, %c1_i32 : i32
    %1 = arith.addi %0, %arg1 : i32
    %c0_i32 = arith.constant 0 : i32
    %2 = arith.minsi %1, %c0_i32 : i32
    %c0_i32_0 = arith.constant 0 : i32
    %c0_i32_1 = arith.constant 0 : i32
    return %2, %c0_i32_0 : i32, i32
  }
  func.func @transform_1(%arg0: i32, %arg1: i32) -> (i32, i32) {
    %c1_i32 = arith.constant 1 : i32
    %0 = arith.muli %arg0, %c1_i32 : i32
    %1 = arith.addi %0, %arg1 : i32
    %c0_i32 = arith.constant 0 : i32
    %2 = arith.minsi %1, %c0_i32 : i32
    %c0_i32_0 = arith.constant 0 : i32
    %c0_i32_1 = arith.constant 0 : i32
    return %2, %c0_i32_0 : i32, i32
  }
  func.func @transform_2(%arg0: i32, %arg1: i32) -> (i32, i32, i32) {
    %c0_i32 = arith.constant 0 : i32
    %c0_i32_0 = arith.constant 0 : i32
    %c0_i32_1 = arith.constant 0 : i32
    return %arg0, %c0_i32, %c0_i32_0 : i32, i32, i32
  }
}

</mosaic_0001>

<llo_original>
// kernel: tpu_custom_call.1
$region0: #{tpu_custom_call.1}
  #allocation0 [shape = 'u32[]', space=smem, size = 0x4, offset = 0x4, fixed_abs, tag = 'smem constant byte address 0x4 - core index']
  #allocation1 [shape = 'u32[144,128]{1,0:T(1,128)}', space=vmem, size = 0x12000, scoped, tag = 'internal scratch']
  %s0 = inlined_call_operand.hbm [shape: f32[16,128], index: 0, kind: input, shape index: {}]
  %s1 = inlined_call_operand.hbm [shape: f32[16,128], index: 1, kind: input, shape index: {}]
  %s2 = inlined_call_operand.hbm [shape: f32[3,8,128], index: 2, kind: output, shape index: {}]
  %s3 = sld [smem:[#allocation0]]
  $region30: #{tpu_custom_call.1} parent=0
    _
  %s5 = ssub.s32 1, %s3
  %s6 = scalar_select 0, %s5, %s3
  $region1: #{tpu_custom_call.1} parent=0
    #allocation2 [shape = 'u8[8192]{0}', space=vmem, size = 0x2000, scoped, tag = 'input window, operand 0, single buffered']
    #allocation3 [shape = 's32[1]{0}', space=sflag, size = 0x4, scoped, tag = 'scoped memory for tpu_custom_call.1']
    #allocation4 [shape = 's32[1]{0}', space=sflag, size = 0x4, scoped, tag = 'scoped memory for tpu_custom_call.1']
    #allocation5 [shape = 'u8[8192]{0}', space=vmem, size = 0x2000, scoped, tag = 'input window, operand 1, single buffered']
    #allocation6 [shape = 's32[1]{0}', space=sflag, size = 0x4, scoped, tag = 'scoped memory for tpu_custom_call.1']
    #allocation7 [shape = 'u8[12288]{0}', space=vmem, size = 0x3000, scoped, tag = 'output window, operand 0, single buffered']
    %7 = vsyncpa [#allocation3], 0
    %8 = vsyncpa [#allocation6], 0
    %9 = vsyncpa [#allocation4], 0
    // Predicated region
    $region2: #{tpu_custom_call.1} parent=1 // pred_check
      _
    $region3: #{tpu_custom_call.1} parent=1 // pred_check_branch
      %11 = sbr.rel (0) target = $region5
    $region4: #{tpu_custom_call.1} parent=1 // pred_region
      %s12 = sadd.s32 0, 0
      %p13 = scmp.lt.s32.totalorder %s12, 0
      %s14 = scalar_select %p13, %s12, 0
      %s15 = smul.u32 2, %s14
      %s17 = ssub.s32 256, 256
      %18 = vsyncadd [#allocation3], %s17
      %s19 = smul.addr %s15, 128
      %s20 = scalar_lea.hbm %s0, %s19
      %s21 = sshll.u32 [#allocation2], 4
      %s22 = int_to_ptr.vmem [resolvable:$true] %s21
      %27 = dma.hbm_to_vmem [thread:$0]  %s20, 256, %s22, [#allocation3], 128, 128, 8
    $region5: #{tpu_custom_call.1} parent=1 // pred_fallthru
      _
    // Predicated region
    $region6: #{tpu_custom_call.1} parent=1 // pred_check
      _
    $region7: #{tpu_custom_call.1} parent=1 // pred_check_branch
      %29 = sbr.rel (0) target = $region9
    $region8: #{tpu_custom_call.1} parent=1 // pred_region
      %s30 = sadd.s32 0, 0
      %p31 = scmp.lt.s32.totalorder %s30, 0
      %s32 = scalar_select %p31, %s30, 0
      %s33 = smul.u32 2, %s32
      %s35 = ssub.s32 256, 256
      %36 = vsyncadd [#allocation6], %s35
      %s37 = smul.addr %s33, 128
      %s38 = scalar_lea.hbm %s1, %s37
      %s39 = sshll.u32 [#allocation5], 4
      %s40 = int_to_ptr.vmem [resolvable:$true] %s39
      %45 = dma.hbm_to_vmem [thread:$0]  %s38, 256, %s40, [#allocation6], 128, 128, 8
    $region9: #{tpu_custom_call.1} parent=1 // pred_fallthru
      _
    // Predicated region
    $region10: #{tpu_custom_call.1} parent=1 // pred_check
      _
    $region11: #{tpu_custom_call.1} parent=1 // pred_check_branch
      %47 = sbr.rel (0) target = $region13
    $region12: #{tpu_custom_call.1} parent=1 // pred_region
      %48 = dma.done [#allocation3], 256
    $region13: #{tpu_custom_call.1} parent=1 // pred_fallthru
      _
    // Predicated region
    $region14: #{tpu_custom_call.1} parent=1 // pred_check
      _
    $region15: #{tpu_custom_call.1} parent=1 // pred_check_branch
      %50 = sbr.rel (0) target = $region17
    $region16: #{tpu_custom_call.1} parent=1 // pred_region
      %51 = dma.done [#allocation6], 256
    $region17: #{tpu_custom_call.1} parent=1 // pred_fallthru
      _
    %s52 = sadd.s32 0, 0
    %p53 = scmp.lt.s32.totalorder %s52, 0
    %s54 = scalar_select %p53, %s52, 0
    %s55 = smul.u32 2, %s54
    %s56 = sadd.s32 0, 0
    %p57 = scmp.lt.s32.totalorder %s56, 0
    %s58 = scalar_select %p57, %s56, 0
    %s59 = smul.u32 2, %s58
    %p60 = scmp.eq.s32.totalorder 0, 0
    // Predicated region
    $region18: #{tpu_custom_call.1} parent=1 // pred_check
      %p61 = pneg %p60
    $region19: #{tpu_custom_call.1} parent=1 // pred_check_branch
      %63 = sbr.rel (%p61) target = $region21
    $region20: #{tpu_custom_call.1} parent=1 // pred_region
      %64 = vst [vmem:[#allocation7] sm:$0xff] 0.0
      %65 = vst [vmem:[#allocation7 + $0x8] sm:$0xff] 0.0
      %66 = vst [vmem:[#allocation7 + $0x10] sm:$0xff] 0.0
    $region21: #{tpu_custom_call.1} parent=1 // pred_fallthru
      _
    %v67 = vld [vmem:[#allocation2] sm:$0xff]
    %v68 = vld [vmem:[#allocation2 + $0x8] sm:$0xff]
    %v69 = vld [vmem:[#allocation5] sm:$0xff]
    %v70 = vld [vmem:[#allocation5 + $0x8] sm:$0xff]
    %v71 = vxor.u32 %v67, 2147483648
    %v72 = vxor.u32 %v68, 2147483648
    %v73 = vmul.f32 %v71, 1.442695
    %v74 = vpow.pop %v73
    %v75 = vmul.f32 %v72, 1.442695
    %v76 = vpow.pop %v75
    %v77 = vadd.f32 %v74, 1.0
    %v78 = vadd.f32 %v76, 1.0
    %v79 = vrcp.pop %v77
    %v80 = vmul.f32 1.0, %v79
    %v81 = vrcp.pop %v78
    %v82 = vmul.f32 1.0, %v81
    %v83 = vld [vmem:[#allocation7] sm:$0xff]
    %v84 = vmul.f32 %v80, %v69
    %v85 = vmul.f32 %v82, %v70
    %v86 = vadd.f32 %v84, %v85
    %v87 = vadd.f32 %v83, %v86
    %88 = vst [vmem:[#allocation7] sm:$0xff] %v87
    %s89 = scalar_lea.vmem [#allocation7], 8
    %v90 = vld [vmem:[%s89] sm:$0xff]
    %v91 = vadd.f32 %v80, %v82
    %v92 = vadd.f32 %v90, %v91
    %93 = vst [vmem:[%s89] sm:$0xff] %v92
    %s94 = scalar_lea.vmem [#allocation7], 16
    %v95 = vld [vmem:[%s94] sm:$0xff]
    %v96 = vadd.f32 %v69, %v70
    %v97 = vadd.f32 %v95, %v96
    %98 = vst [vmem:[%s94] sm:$0xff] %v97
    // Predicated region
    $region22: #{tpu_custom_call.1} parent=1 // pred_check
      _
    $region23: #{tpu_custom_call.1} parent=1 // pred_check_branch
      %100 = sbr.rel (0) target = $region25
    $region24: #{tpu_custom_call.1} parent=1 // pred_region
      %s102 = ssub.s32 384, 384
      %103 = vsyncadd [#allocation4], %s102
      %s104 = sshll.u32 [#allocation7], 4
      %s105 = int_to_ptr.vmem [resolvable:$true] %s104
      %110 = dma.vmem_to_hbm [thread:$0]  %s105, 384, %s2, [#allocation4], 128, 128, 8
    $region25: #{tpu_custom_call.1} parent=1 // pred_fallthru
      _
    // Predicated region
    $region26: #{tpu_custom_call.1} parent=1 // pred_check
      _
    $region27: #{tpu_custom_call.1} parent=1 // pred_check_branch
      %112 = sbr.rel (0) target = $region29
    $region28: #{tpu_custom_call.1} parent=1 // pred_region
      %113 = dma.done [#allocation4], 384
    $region29: #{tpu_custom_call.1} parent=1 // pred_fallthru
      _
    %114 = vsyncpa [#allocation3], 1
    %115 = vsyncpa [#allocation6], 1
    %116 = vsyncpa [#allocation4], 1

</llo_original>
